<compile_context>
chip_gen: v6e
topology: v6e:2x2x1
jax: 0.10.0
libtpu: 0.0.40
codegen_flags: <defaults>
</compile_context>

<pallas_src>
import jax
import jax.numpy as jnp
from jax.experimental import pallas as pl
from jax.experimental.pallas import tpu as pltpu


def _round_up(n: int, m: int) -> int:
    return ((n + m - 1) // m) * m


def _actor_kernel(x_ref, w1_ref, b1_ref, w2_ref, b2_ref, w3_ref, b3_ref, out_ref):
    # Fused MLP forward + Gaussian mean head for one batch tile.
    # x/weights are bf16; all accumulation + elementwise math is f32.
    x = x_ref[...]                                     # (TM, OBS_P) bf16
    b1 = b1_ref[...]                                   # (1, HID_P) f32
    b2 = b2_ref[...]                                   # (1, HID_P) f32
    b3 = b3_ref[...]                                   # (1, ACT_P) f32

    h1 = jnp.tanh(
        jnp.dot(x, w1_ref[...], preferred_element_type=jnp.float32) + b1
    )
    h2 = jnp.tanh(
        jnp.dot(h1.astype(jnp.bfloat16), w2_ref[...],
                preferred_element_type=jnp.float32) + b2
    )
    mean = (
        jnp.dot(h2.astype(jnp.bfloat16), w3_ref[...],
                preferred_element_type=jnp.float32) + b3
    )
    out_ref[...] = mean.astype(out_ref.dtype)
    # TODO(synk): stochastic=True path (sampling + log_prob) would need
    # pltpu.prng_seed/prng_random_bits; only the deterministic default path
    # of InferenceActor.forward is implemented here.


def inference_actor_forward(x, params, *, tm_max=512):
    """Deterministic actor forward: x [B, obs_dim] -> action mean [B, act_dim]."""
    w1, b1, w2, b2, w3, b3 = params          # f32, (in_features, out_features)
    B, obs = x.shape
    hid = w1.shape[1]
    act = w3.shape[1]

    # Lane/sublane-friendly padded sizes.
    obs_p = _round_up(obs, 8)
    hid_p = _round_up(hid, 128)
    act_p = _round_up(act, 128)

    # Batch tiling: TM up to tm_max rows; pad batch so TM divides it.
    b8 = _round_up(B, 8)
    tm = min(tm_max, b8)
    b_pad = _round_up(b8, tm)
    grid_m = b_pad // tm

    bf16 = jnp.bfloat16
    xp = jnp.zeros((b_pad, obs_p), bf16).at[:B, :obs].set(x.astype(bf16))
    w1p = jnp.zeros((obs_p, hid_p), bf16).at[:obs, :hid].set(w1.astype(bf16))
    w2p = jnp.zeros((hid_p, hid_p), bf16).at[:hid, :hid].set(w2.astype(bf16))
    w3p = jnp.zeros((hid_p, act_p), bf16).at[:hid, :act].set(w3.astype(bf16))
    b1p = jnp.zeros((1, hid_p), jnp.float32).at[:, :hid].set(b1)
    b2p = jnp.zeros((1, hid_p), jnp.float32).at[:, :hid].set(b2)
    b3p = jnp.zeros((1, act_p), jnp.float32).at[:, :act].set(b3)

    flops = 2 * b_pad * (obs_p * hid_p + hid_p * hid_p + hid_p * act_p)
    transcendentals = 2 * b_pad * hid_p
    bytes_accessed = (
        xp.size * 2 + w1p.size * 2 + w2p.size * 2 + w3p.size * 2
        + (b1p.size + b2p.size + b3p.size) * 4
        + b_pad * act_p * 4
    )

    out_padded = pl.pallas_call(
        _actor_kernel,
        out_shape=jax.ShapeDtypeStruct((b_pad, act_p), jnp.float32),
        grid=(grid_m,),
        in_specs=[
            # activations: tiled over batch
            pl.BlockSpec((tm, obs_p), lambda i: (i, 0)),
            # weights / biases: VMEM-resident across all grid steps
            pl.BlockSpec((obs_p, hid_p), lambda i: (0, 0)),
            pl.BlockSpec((1, hid_p), lambda i: (0, 0)),
            pl.BlockSpec((hid_p, hid_p), lambda i: (0, 0)),
            pl.BlockSpec((1, hid_p), lambda i: (0, 0)),
            pl.BlockSpec((hid_p, act_p), lambda i: (0, 0)),
            pl.BlockSpec((1, act_p), lambda i: (0, 0)),
        ],
        out_specs=pl.BlockSpec((tm, act_p), lambda i: (i, 0)),
        compiler_params=pltpu.CompilerParams(
            dimension_semantics=("parallel",),
        ),
        cost_estimate=pl.CostEstimate(
            flops=flops,
            transcendentals=transcendentals,
            bytes_accessed=bytes_accessed,
        ),
    )(xp, w1p, b1p, w2p, b2p, w3p, b3p)

    # Slice padded batch rows and padded action lanes back to true sizes.
    return out_padded[:B, :act]


def init_params(key, obs_dim, hidden_dim, act_dim):
    """Deterministic synthetic parameters (shapes match MLP + Gaussian head)."""
    ks = jax.random.split(key, 6)
    scale = 0.1
    # Weights stored as (in_features, out_features) == torch weight.T
    w1 = scale * jax.random.normal(ks[0], (obs_dim, hidden_dim), jnp.float32)
    b1 = scale * jax.random.normal(ks[1], (1, hidden_dim), jnp.float32)
    w2 = scale * jax.random.normal(ks[2], (hidden_dim, hidden_dim), jnp.float32)
    b2 = scale * jax.random.normal(ks[3], (1, hidden_dim), jnp.float32)
    w3 = scale * jax.random.normal(ks[4], (hidden_dim, act_dim), jnp.float32)
    b3 = scale * jax.random.normal(ks[5], (1, act_dim), jnp.float32)
    return (w1, b1, w2, b2, w3, b3)


def reference_forward(x, params):
    w1, b1, w2, b2, w3, b3 = params
    h1 = jnp.tanh(x @ w1 + b1)
    h2 = jnp.tanh(h1 @ w2 + b2)
    return h2 @ w3 + b3


if __name__ == "__main__":
    key = jax.random.PRNGKey(0)
    k_x, k_p, k_x2 = jax.random.split(key, 3)

    B, OBS, HID, ACT = 4, 32, 64, 8
    params = init_params(k_p, OBS, HID, ACT)

    # Small-batch case (single tile).
    x = jax.random.normal(k_x, (B, OBS), jnp.float32)
    y = jax.block_until_ready(inference_actor_forward(x, params))
    y_ref = reference_forward(x, params)
    assert y.shape == (B, ACT)
    # bf16 matmul inputs with f32 accumulation -> loosened tolerance.
    assert jnp.allclose(y, y_ref, atol=2e-2, rtol=2e-2), "mismatch vs JAX reference"

    # Larger batch exercising multiple grid tiles + batch padding.
    B2 = 600
    x2 = jax.random.normal(k_x2, (B2, OBS), jnp.float32)
    y2 = jax.block_until_ready(inference_actor_forward(x2, params))
    y2_ref = reference_forward(x2, params)
    assert y2.shape == (B2, ACT)
    assert jnp.allclose(y2, y2_ref, atol=2e-2, rtol=2e-2), "mismatch (tiled batch)"

    print("KERNEL_OK")
</pallas_src>

<mosaic_0001>
module attributes {stable_mosaic.version = 11 : i64} {
  func.func @_actor_kernel(%arg0: i32, %arg1: memref<8x32xbf16, #tpu.memory_space<vmem>>, %arg2: memref<32x128xbf16, #tpu.memory_space<vmem>>, %arg3: memref<1x128xf32, #tpu.memory_space<vmem>>, %arg4: memref<128x128xbf16, #tpu.memory_space<vmem>>, %arg5: memref<1x128xf32, #tpu.memory_space<vmem>>, %arg6: memref<128x128xbf16, #tpu.memory_space<vmem>>, %arg7: memref<1x128xf32, #tpu.memory_space<vmem>>, %arg8: memref<8x128xf32, #tpu.memory_space<vmem>>) attributes {dimension_semantics = [#tpu.dimension_semantics<parallel>], iteration_bounds = array<i64: 1>, scalar_prefetch = 0 : i64, scratch_operands = 0 : i64, tpu.core_type = #tpu.core_type<tc>, window_params = [{transform_indices = @transform_0, window_bounds = array<i64: 8, 32>}, {pipeline_mode = #tpu.pipeline_mode<synchronous>, transform_indices = @transform_1, window_bounds = array<i64: 32, 128>}, {pipeline_mode = #tpu.pipeline_mode<synchronous>, transform_indices = @transform_2, window_bounds = array<i64: 1, 128>}, {pipeline_mode = #tpu.pipeline_mode<synchronous>, transform_indices = @transform_3, window_bounds = array<i64: 128, 128>}, {pipeline_mode = #tpu.pipeline_mode<synchronous>, transform_indices = @transform_4, window_bounds = array<i64: 1, 128>}, {pipeline_mode = #tpu.pipeline_mode<synchronous>, transform_indices = @transform_5, window_bounds = array<i64: 128, 128>}, {pipeline_mode = #tpu.pipeline_mode<synchronous>, transform_indices = @transform_6, window_bounds = array<i64: 1, 128>}, {transform_indices = @transform_7, window_bounds = array<i64: 8, 128>}]} {
    %c0 = arith.constant 0 : index
    %c0_0 = arith.constant 0 : index
    %0 = vector.load %arg1[%c0, %c0_0] : memref<8x32xbf16, #tpu.memory_space<vmem>>, vector<8x32xbf16>
    %c0_1 = arith.constant 0 : index
    %c0_2 = arith.constant 0 : index
    %1 = vector.load %arg3[%c0_1, %c0_2] : memref<1x128xf32, #tpu.memory_space<vmem>>, vector<1x128xf32>
    %c0_3 = arith.constant 0 : index
    %c0_4 = arith.constant 0 : index
    %2 = vector.load %arg5[%c0_3, %c0_4] : memref<1x128xf32, #tpu.memory_space<vmem>>, vector<1x128xf32>
    %c0_5 = arith.constant 0 : index
    %c0_6 = arith.constant 0 : index
    %3 = vector.load %arg7[%c0_5, %c0_6] : memref<1x128xf32, #tpu.memory_space<vmem>>, vector<1x128xf32>
    %c0_7 = arith.constant 0 : index
    %c0_8 = arith.constant 0 : index
    %4 = vector.load %arg2[%c0_7, %c0_8] : memref<32x128xbf16, #tpu.memory_space<vmem>>, vector<32x128xbf16>
    %cst = arith.constant dense<0.000000e+00> : vector<8x128xf32>
    %5 = tpu.matmul %0, %4, %cst {dimension_numbers = #tpu.dot_dimension_numbers<[1], [0], [0], [1], [0, 0, 1, 1], [], []>} : vector<8x32xbf16>, vector<32x128xbf16>, vector<8x128xf32> -> vector<8x128xf32>
    %6 = vector.broadcast %1 : vector<1x128xf32> to vector<8x128xf32>
    %7 = arith.addf %5, %6 : vector<8x128xf32>
    %8 = math.tanh %7 : vector<8x128xf32>
    %9 = arith.truncf %8 : vector<8x128xf32> to vector<8x128xbf16>
    %c0_9 = arith.constant 0 : index
    %c0_10 = arith.constant 0 : index
    %10 = vector.load %arg4[%c0_9, %c0_10] : memref<128x128xbf16, #tpu.memory_space<vmem>>, vector<128x128xbf16>
    %cst_11 = arith.constant dense<0.000000e+00> : vector<8x128xf32>
    %11 = tpu.matmul %9, %10, %cst_11 {dimension_numbers = #tpu.dot_dimension_numbers<[1], [0], [0], [1], [0, 0, 1, 1], [], []>} : vector<8x128xbf16>, vector<128x128xbf16>, vector<8x128xf32> -> vector<8x128xf32>
    %12 = vector.broadcast %2 : vector<1x128xf32> to vector<8x128xf32>
    %13 = arith.addf %11, %12 : vector<8x128xf32>
    %14 = math.tanh %13 : vector<8x128xf32>
    %15 = arith.truncf %14 : vector<8x128xf32> to vector<8x128xbf16>
    %c0_12 = arith.constant 0 : index
    %c0_13 = arith.constant 0 : index
    %16 = vector.load %arg6[%c0_12, %c0_13] : memref<128x128xbf16, #tpu.memory_space<vmem>>, vector<128x128xbf16>
    %cst_14 = arith.constant dense<0.000000e+00> : vector<8x128xf32>
    %17 = tpu.matmul %15, %16, %cst_14 {dimension_numbers = #tpu.dot_dimension_numbers<[1], [0], [0], [1], [0, 0, 1, 1], [], []>} : vector<8x128xbf16>, vector<128x128xbf16>, vector<8x128xf32> -> vector<8x128xf32>
    %18 = vector.broadcast %3 : vector<1x128xf32> to vector<8x128xf32>
    %19 = arith.addf %17, %18 : vector<8x128xf32>
    %c0_15 = arith.constant 0 : index
    %c0_16 = arith.constant 0 : index
    %20 = vector.load %arg8[%c0_15, %c0_16] : memref<8x128xf32, #tpu.memory_space<vmem>>, vector<8x128xf32>
    tpu.vector_store %arg8[%c0_15, %c0_16], %19 {strides = array<i32>} : memref<8x128xf32, #tpu.memory_space<vmem>>, vector<8x128xf32>,
    return
  }
  func.func @transform_0(%arg0: i32) -> (i32, i32) {
    %c0_i32 = arith.constant 0 : i32
    %c0_i32_0 = arith.constant 0 : i32
    return %arg0, %c0_i32 : i32, i32
  }
  func.func @transform_1(%arg0: i32) -> (i32, i32) {
    %c0_i32 = arith.constant 0 : i32
    %c0_i32_0 = arith.constant 0 : i32
    %c0_i32_1 = arith.constant 0 : i32
    return %c0_i32, %c0_i32_0 : i32, i32
  }
  func.func @transform_2(%arg0: i32) -> (i32, i32) {
    %c0_i32 = arith.constant 0 : i32
    %c0_i32_0 = arith.constant 0 : i32
    %c0_i32_1 = arith.constant 0 : i32
    return %c0_i32, %c0_i32_0 : i32, i32
  }
  func.func @transform_3(%arg0: i32) -> (i32, i32) {
    %c0_i32 = arith.constant 0 : i32
    %c0_i32_0 = arith.constant 0 : i32
    %c0_i32_1 = arith.constant 0 : i32
    return %c0_i32, %c0_i32_0 : i32, i32
  }
  func.func @transform_4(%arg0: i32) -> (i32, i32) {
    %c0_i32 = arith.constant 0 : i32
    %c0_i32_0 = arith.constant 0 : i32
    %c0_i32_1 = arith.constant 0 : i32
    return %c0_i32, %c0_i32_0 : i32, i32
  }
  func.func @transform_5(%arg0: i32) -> (i32, i32) {
    %c0_i32 = arith.constant 0 : i32
    %c0_i32_0 = arith.constant 0 : i32
    %c0_i32_1 = arith.constant 0 : i32
    return %c0_i32, %c0_i32_0 : i32, i32
  }
  func.func @transform_6(%arg0: i32) -> (i32, i32) {
    %c0_i32 = arith.constant 0 : i32
    %c0_i32_0 = arith.constant 0 : i32
    %c0_i32_1 = arith.constant 0 : i32
    return %c0_i32, %c0_i32_0 : i32, i32
  }
  func.func @transform_7(%arg0: i32) -> (i32, i32) {
    %c0_i32 = arith.constant 0 : i32
    %c0_i32_0 = arith.constant 0 : i32
    return %arg0, %c0_i32 : i32, i32
  }
}

</mosaic_0001>

<llo_original>
// kernel: tpu_custom_call.1
$region0: #{tpu_custom_call.1}
  #allocation0 [shape = 'u32[]', space=smem, size = 0x4, offset = 0x4, fixed_abs, tag = 'smem constant byte address 0x4 - core index']
  #allocation1 [shape = 'u32[144,128]{1,0:T(1,128)}', space=vmem, size = 0x12000, scoped, tag = 'internal scratch']
  %s0 = inlined_call_operand.hbm [shape: bf16[8,32], index: 0, kind: input, shape index: {}]
  %s1 = inlined_call_operand.hbm [shape: bf16[32,128], index: 1, kind: input, shape index: {}]
  %s2 = inlined_call_operand.vmem [shape: f32[1,128], index: 2, kind: input, shape index: {}]
  %s3 = inlined_call_operand.hbm [shape: bf16[128,128], index: 3, kind: input, shape index: {}]
  %s4 = inlined_call_operand.vmem [shape: f32[1,128], index: 4, kind: input, shape index: {}]
  %s5 = inlined_call_operand.hbm [shape: bf16[128,128], index: 5, kind: input, shape index: {}]
  %s6 = inlined_call_operand.vmem [shape: f32[1,128], index: 6, kind: input, shape index: {}]
  %s7 = inlined_call_operand.hbm [shape: f32[8,128], index: 7, kind: output, shape index: {}]
  %s8 = sld [smem:[#allocation0]]
  $region54: #{tpu_custom_call.1} parent=0
    _
  %s10 = ssub.s32 1, %s8
  %s11 = scalar_select 0, %s10, %s8
  $region1: #{tpu_custom_call.1} parent=0
    #allocation2 [shape = 'u8[2048]{0}', space=vmem, size = 0x800, scoped, tag = 'input window, operand 0, single buffered']
    #allocation3 [shape = 's32[1]{0}', space=sflag, size = 0x4, scoped, tag = 'scoped memory for tpu_custom_call.1']
    #allocation4 [shape = 's32[1]{0}', space=sflag, size = 0x4, scoped, tag = 'scoped memory for tpu_custom_call.1']
    #allocation5 [shape = 'u8[8192]{0}', space=vmem, size = 0x2000, scoped, tag = 'input window, operand 1, single buffered']
    #allocation6 [shape = 's32[1]{0}', space=sflag, size = 0x4, scoped, tag = 'scoped memory for tpu_custom_call.1']
    #allocation7 [shape = 'u8[32768]{0}', space=vmem, size = 0x8000, scoped, tag = 'input window, operand 3, single buffered']
    #allocation8 [shape = 'u8[32768]{0}', space=vmem, size = 0x8000, scoped, tag = 'input window, operand 5, single buffered']
    #allocation9 [shape = 's32[1]{0}', space=sflag, size = 0x4, scoped, tag = 'scoped memory for tpu_custom_call.1']
    #allocation10 [shape = 'u8[4096]{0}', space=vmem, size = 0x1000, scoped, tag = 'output window, operand 0, single buffered']
    %12 = vsyncpa [#allocation3], 0
    %13 = vsyncpa [#allocation6], 0
    %14 = vsyncpa [#allocation9], 0
    %15 = vsyncpa [#allocation4], 0
    // Predicated region
    $region2: #{tpu_custom_call.1} parent=1 // pred_check
      _
    $region3: #{tpu_custom_call.1} parent=1 // pred_check_branch
      %17 = sbr.rel (0) target = $region5
    $region4: #{tpu_custom_call.1} parent=1 // pred_region
      %s19 = ssub.s32 64, 64
      %20 = vsyncadd [#allocation3], %s19
      %s22 = sshll.u32 [#allocation2], 4
      %s23 = int_to_ptr.vmem [resolvable:$true] %s22
      %25 = dma.hbm_to_vmem [thread:$0]  %s0, 64, %s23, [#allocation3]
    $region5: #{tpu_custom_call.1} parent=1 // pred_fallthru
      _
    // Predicated region
    $region6: #{tpu_custom_call.1} parent=1 // pred_check
      _
    $region7: #{tpu_custom_call.1} parent=1 // pred_check_branch
      %27 = sbr.rel (0) target = $region9
    $region8: #{tpu_custom_call.1} parent=1 // pred_region
      %s29 = ssub.s32 256, 256
      %30 = vsyncadd [#allocation6], %s29
      %s31 = sshll.u32 [#allocation5], 4
      %s32 = int_to_ptr.vmem [resolvable:$true] %s31
      %37 = dma.hbm_to_vmem [thread:$0]  %s1, 256, %s32, [#allocation6], 64, 64, 4
    $region9: #{tpu_custom_call.1} parent=1 // pred_fallthru
      _
    // Predicated region
    $region10: #{tpu_custom_call.1} parent=1 // pred_check
      _
    $region11: #{tpu_custom_call.1} parent=1 // pred_check_branch
      %39 = sbr.rel (0) target = $region13
    $region12: #{tpu_custom_call.1} parent=1 // pred_region
      _
    $region13: #{tpu_custom_call.1} parent=1 // pred_fallthru
      _
    // Predicated region
    $region14: #{tpu_custom_call.1} parent=1 // pred_check
      _
    $region15: #{tpu_custom_call.1} parent=1 // pred_check_branch
      %41 = sbr.rel (0) target = $region17
    $region16: #{tpu_custom_call.1} parent=1 // pred_region
      %s43 = ssub.s32 1024, 1024
      %44 = vsyncadd [#allocation6], %s43
      %s45 = sshll.u32 [#allocation7], 4
      %s46 = int_to_ptr.vmem [resolvable:$true] %s45
      %51 = dma.hbm_to_vmem [thread:$0]  %s3, 1024, %s46, [#allocation6], 64, 64, 4
    $region17: #{tpu_custom_call.1} parent=1 // pred_fallthru
      _
    // Predicated region
    $region18: #{tpu_custom_call.1} parent=1 // pred_check
      _
    $region19: #{tpu_custom_call.1} parent=1 // pred_check_branch
      %53 = sbr.rel (0) target = $region21
    $region20: #{tpu_custom_call.1} parent=1 // pred_region
      _
    $region21: #{tpu_custom_call.1} parent=1 // pred_fallthru
      _
    // Predicated region
    $region22: #{tpu_custom_call.1} parent=1 // pred_check
      _
    $region23: #{tpu_custom_call.1} parent=1 // pred_check_branch
      %55 = sbr.rel (0) target = $region25
    $region24: #{tpu_custom_call.1} parent=1 // pred_region
      %s57 = ssub.s32 1024, 1024
      %58 = vsyncadd [#allocation9], %s57
      %s59 = sshll.u32 [#allocation8], 4
      %s60 = int_to_ptr.vmem [resolvable:$true] %s59
      %65 = dma.hbm_to_vmem [thread:$0]  %s5, 1024, %s60, [#allocation9], 64, 64, 4
    $region25: #{tpu_custom_call.1} parent=1 // pred_fallthru
      _
    // Predicated region
    $region26: #{tpu_custom_call.1} parent=1 // pred_check
      _
    $region27: #{tpu_custom_call.1} parent=1 // pred_check_branch
      %67 = sbr.rel (0) target = $region29
    $region28: #{tpu_custom_call.1} parent=1 // pred_region
      _
    $region29: #{tpu_custom_call.1} parent=1 // pred_fallthru
      _
    // Predicated region
    $region30: #{tpu_custom_call.1} parent=1 // pred_check
      _
    $region31: #{tpu_custom_call.1} parent=1 // pred_check_branch
      %69 = sbr.rel (0) target = $region33
    $region32: #{tpu_custom_call.1} parent=1 // pred_region
      %70 = dma.done [#allocation3], 64
    $region33: #{tpu_custom_call.1} parent=1 // pred_fallthru
      _
    // Predicated region
    $region34: #{tpu_custom_call.1} parent=1 // pred_check
      _
    $region35: #{tpu_custom_call.1} parent=1 // pred_check_branch
      %72 = sbr.rel (0) target = $region37
    $region36: #{tpu_custom_call.1} parent=1 // pred_region
      %73 = dma.done [#allocation6], 256
    $region37: #{tpu_custom_call.1} parent=1 // pred_fallthru
      _
    // Predicated region
    $region38: #{tpu_custom_call.1} parent=1 // pred_check
      _
    $region39: #{tpu_custom_call.1} parent=1 // pred_check_branch
      %75 = sbr.rel (0) target = $region41
    $region40: #{tpu_custom_call.1} parent=1 // pred_region
      %76 = dma.done [#allocation6], 1024
    $region41: #{tpu_custom_call.1} parent=1 // pred_fallthru
      _
    // Predicated region
    $region42: #{tpu_custom_call.1} parent=1 // pred_check
      _
    $region43: #{tpu_custom_call.1} parent=1 // pred_check_branch
      %78 = sbr.rel (0) target = $region45
    $region44: #{tpu_custom_call.1} parent=1 // pred_region
      %79 = dma.done [#allocation9], 1024
    $region45: #{tpu_custom_call.1} parent=1 // pred_fallthru
      _
    %v81 = vld [vmem:[#allocation2] sm:$0xf]
    %v82 = vld [vmem:[%s2] sm:$0x1]
    %v83 = vld [vmem:[%s4] sm:$0x1]
    %v84 = vld [vmem:[%s6] sm:$0x1]
    %v85 = vld [vmem:[#allocation5] sm:$0xf]
    %v86 = vld [vmem:[#allocation5 + $0x4] sm:$0xf]
    %v87 = vld [vmem:[#allocation5 + $0x8] sm:$0xf]
    %v88 = vld [vmem:[#allocation5 + $0xc] sm:$0xf]
    %v90 = vlaneseq
    %v91 = vshrl.u32 %v90, 7
    %v92 = vsub.s32 0, %v91
    %v93 = vrot.slane %v82, %v92
    %v99 = vunpack.c.l.b16 %v85
    %v100 = vunpack.c.l.b16 %v86
    %v101 = vunpack.c.l.b16 %v87
    %v102 = vunpack.c.l.b16 %v88
    %v103 = vpack.c.b16 %v100, %v99
    %v104 = vpack.c.b16 %v102, %v101
    %vm107 = vcmask 261120
    %v109 = vsel %vm107, %v81, 0
    %111 = vmatprep.subr.bf16.mxu0 0
    %112 = vmatpush1.bf16.msra.mxu0 0
    %113 = vmatprep.subr.bf16.mxu0 0
    %114 = vmatpush1.bf16.msra.mxu0 0
    %115 = vmatprep.subr.bf16.mxu0 0
    %116 = vmatpush1.bf16.msra.mxu0 0
    %117 = vmatprep.subr.bf16.mxu0 0
    %118 = vmatpush1.bf16.msra.mxu0 0
    %119 = vmatprep.subr.bf16.mxu0 0
    %120 = vmatpush1.bf16.msra.mxu0 0
    %121 = vmatprep.subr.bf16.mxu0 0
    %122 = vmatpush1.bf16.msra.mxu0 0
    %123 = vmatprep.subr.bf16.mxu0 0
    %124 = vmatpush1.bf16.msra.mxu0 %v104
    %125 = vmatprep.subr.bf16.mxu0 0
    %126 = vmatpush1.bf16.msra.mxu0 %v103
    %127 = vmatprep.subr.bf16.mxu0 0
    %128 = vmatpush2.bf16.msra.mxu0 0
    %129 = vmatprep.subr.bf16.mxu0 0
    %130 = vmatpush2.bf16.msra.mxu0 0
    %131 = vmatprep.subr.bf16.mxu0 0
    %132 = vmatpush2.bf16.msra.mxu0 0
    %133 = vmatprep.subr.bf16.mxu0 0
    %134 = vmatpush2.bf16.msra.mxu0 0
    %135 = vmatprep.subr.bf16.mxu0 0
    %136 = vmatpush2.bf16.msra.mxu0 0
    %137 = vmatprep.subr.bf16.mxu0 0
    %138 = vmatpush2.bf16.msra.mxu0 0
    %139 = vmatprep.subr.bf16.mxu0 0
    %140 = vmatpush2.bf16.msra.mxu0 0
    %141 = vmatprep.subr.bf16.mxu0 0
    %142 = vmatpush2.bf16.msra.mxu0 0
    %143 = vmatprep.mubr.bf16.mxu0 0
    %144 = vmatmul.mubr.bf16.gmra.mxu0 %v109
    %v145 = vpop.f32.mrf.mxu0
    %v146 = vadd.f32 %v93, %v145
    %v147 = vpop.f32.mrf.mxu0
    %v148 = vpop.f32.mrf.mxu0
    %v149 = vpop.f32.mrf.mxu0
    %150 = vdwg.mxu0
    %v151 = vtanh.pop %v146
    %v152 = vpack.c.bf16 %v151, %v151
    %v153 = vld [vmem:[#allocation7] sm:$0xf]
    %v154 = vld [vmem:[#allocation7 + $0x4] sm:$0xf]
    %v155 = vld [vmem:[#allocation7 + $0x8] sm:$0xf]
    %v156 = vld [vmem:[#allocation7 + $0xc] sm:$0xf]
    %v157 = vld [vmem:[#allocation7 + $0x10] sm:$0xf]
    %v158 = vld [vmem:[#allocation7 + $0x14] sm:$0xf]
    %v159 = vld [vmem:[#allocation7 + $0x18] sm:$0xf]
    %v160 = vld [vmem:[#allocation7 + $0x1c] sm:$0xf]
    %v161 = vld [vmem:[#allocation7 + $0x20] sm:$0xf]
    %v162 = vld [vmem:[#allocation7 + $0x24] sm:$0xf]
    %v163 = vld [vmem:[#allocation7 + $0x28] sm:$0xf]
    %v164 = vld [vmem:[#allocation7 + $0x2c] sm:$0xf]
    %v165 = vld [vmem:[#allocation7 + $0x30] sm:$0xf]
    %v166 = vld [vmem:[#allocation7 + $0x34] sm:$0xf]
    %v167 = vld [vmem:[#allocation7 + $0x38] sm:$0xf]
    %v168 = vld [vmem:[#allocation7 + $0x3c] sm:$0xf]
    %v170 = vlaneseq
    %v171 = vshrl.u32 %v170, 7
    %v172 = vsub.s32 0, %v171
    %v173 = vrot.slane %v83, %v172
    %v191 = vunpack.c.l.b16 %v153
    %v192 = vunpack.c.l.b16 %v154
    %v193 = vunpack.c.l.b16 %v155
    %v194 = vunpack.c.l.b16 %v156
    %v195 = vunpack.c.l.b16 %v157
    %v196 = vunpack.c.l.b16 %v158
    %v197 = vunpack.c.l.b16 %v159
    %v198 = vunpack.c.l.b16 %v160
    %v199 = vunpack.c.l.b16 %v161
    %v200 = vunpack.c.l.b16 %v162
    %v201 = vunpack.c.l.b16 %v163
    %v202 = vunpack.c.l.b16 %v164
    %v203 = vunpack.c.l.b16 %v165
    %v204 = vunpack.c.l.b16 %v166
    %v205 = vunpack.c.l.b16 %v167
    %v206 = vunpack.c.l.b16 %v168
    %v207 = vpack.c.b16 %v192, %v191
    %v208 = vpack.c.b16 %v194, %v193
    %v209 = vpack.c.b16 %v196, %v195
    %v210 = vpack.c.b16 %v198, %v197
    %v211 = vpack.c.b16 %v200, %v199
    %v212 = vpack.c.b16 %v202, %v201
    %v213 = vpack.c.b16 %v204, %v203
    %v214 = vpack.c.b16 %v206, %v205
    %223 = vmatprep.subr.bf16.mxu0 0
    %224 = vmatpush1.bf16.msra.mxu0 %v214
    %225 = vmatprep.subr.bf16.mxu0 0
    %226 = vmatpush1.bf16.msra.mxu0 %v213
    %227 = vmatprep.subr.bf16.mxu0 0
    %228 = vmatpush1.bf16.msra.mxu0 %v212
    %229 = vmatprep.subr.bf16.mxu0 0
    %230 = vmatpush1.bf16.msra.mxu0 %v211
    %231 = vmatprep.subr.bf16.mxu0 0
    %232 = vmatpush1.bf16.msra.mxu0 %v210
    %233 = vmatprep.subr.bf16.mxu0 0
    %234 = vmatpush1.bf16.msra.mxu0 %v209
    %235 = vmatprep.subr.bf16.mxu0 0
    %236 = vmatpush1.bf16.msra.mxu0 %v208
    %237 = vmatprep.subr.bf16.mxu0 0
    %238 = vmatpush1.bf16.msra.mxu0 %v207
    %239 = vmatprep.subr.bf16.mxu0 0
    %240 = vmatpush2.bf16.msra.mxu0 0
    %241 = vmatprep.subr.bf16.mxu0 0
    %242 = vmatpush2.bf16.msra.mxu0 0
    %243 = vmatprep.subr.bf16.mxu0 0
    %244 = vmatpush2.bf16.msra.mxu0 0
    %245 = vmatprep.subr.bf16.mxu0 0
    %246 = vmatpush2.bf16.msra.mxu0 0
    %247 = vmatprep.subr.bf16.mxu0 0
    %248 = vmatpush2.bf16.msra.mxu0 0
    %249 = vmatprep.subr.bf16.mxu0 0
    %250 = vmatpush2.bf16.msra.mxu0 0
    %251 = vmatprep.subr.bf16.mxu0 0
    %252 = vmatpush2.bf16.msra.mxu0 0
    %253 = vmatprep.subr.bf16.mxu0 0
    %254 = vmatpush2.bf16.msra.mxu0 0
    %255 = vmatprep.mubr.bf16.mxu0 0
    %256 = vmatmul.mubr.bf16.gmra.mxu0 %v152
    %v257 = vpop.f32.mrf.mxu0
    %v258 = vadd.f32 %v173, %v257
    %v259 = vpop.f32.mrf.mxu0
    %v260 = vpop.f32.mrf.mxu0
    %v261 = vpop.f32.mrf.mxu0
    %262 = vdwg.mxu0
    %v263 = vtanh.pop %v258
    %v264 = vpack.c.bf16 %v263, %v263
    %v265 = vld [vmem:[#allocation8] sm:$0xf]
    %v266 = vld [vmem:[#allocation8 + $0x4] sm:$0xf]
    %v267 = vld [vmem:[#allocation8 + $0x8] sm:$0xf]
    %v268 = vld [vmem:[#allocation8 + $0xc] sm:$0xf]
    %v269 = vld [vmem:[#allocation8 + $0x10] sm:$0xf]
    %v270 = vld [vmem:[#allocation8 + $0x14] sm:$0xf]
    %v271 = vld [vmem:[#allocation8 + $0x18] sm:$0xf]
    %v272 = vld [vmem:[#allocation8 + $0x1c] sm:$0xf]
    %v273 = vld [vmem:[#allocation8 + $0x20] sm:$0xf]
    %v274 = vld [vmem:[#allocation8 + $0x24] sm:$0xf]
    %v275 = vld [vmem:[#allocation8 + $0x28] sm:$0xf]
    %v276 = vld [vmem:[#allocation8 + $0x2c] sm:$0xf]
    %v277 = vld [vmem:[#allocation8 + $0x30] sm:$0xf]
    %v278 = vld [vmem:[#allocation8 + $0x34] sm:$0xf]
    %v279 = vld [vmem:[#allocation8 + $0x38] sm:$0xf]
    %v280 = vld [vmem:[#allocation8 + $0x3c] sm:$0xf]
    %v282 = vlaneseq
    %v283 = vshrl.u32 %v282, 7
    %v284 = vsub.s32 0, %v283
    %v285 = vrot.slane %v84, %v284
    %v303 = vunpack.c.l.b16 %v265
    %v304 = vunpack.c.l.b16 %v266
    %v305 = vunpack.c.l.b16 %v267
    %v306 = vunpack.c.l.b16 %v268
    %v307 = vunpack.c.l.b16 %v269
    %v308 = vunpack.c.l.b16 %v270
    %v309 = vunpack.c.l.b16 %v271
    %v310 = vunpack.c.l.b16 %v272
    %v311 = vunpack.c.l.b16 %v273
    %v312 = vunpack.c.l.b16 %v274
    %v313 = vunpack.c.l.b16 %v275
    %v314 = vunpack.c.l.b16 %v276
    %v315 = vunpack.c.l.b16 %v277
    %v316 = vunpack.c.l.b16 %v278
    %v317 = vunpack.c.l.b16 %v279
    %v318 = vunpack.c.l.b16 %v280
    %v319 = vpack.c.b16 %v304, %v303
    %v320 = vpack.c.b16 %v306, %v305
    %v321 = vpack.c.b16 %v308, %v307
    %v322 = vpack.c.b16 %v310, %v309
    %v323 = vpack.c.b16 %v312, %v311
    %v324 = vpack.c.b16 %v314, %v313
    %v325 = vpack.c.b16 %v316, %v315
    %v326 = vpack.c.b16 %v318, %v317
    %335 = vmatprep.subr.bf16.mxu0 0
    %336 = vmatpush1.bf16.msra.mxu0 %v326
    %337 = vmatprep.subr.bf16.mxu0 0
    %338 = vmatpush1.bf16.msra.mxu0 %v325
    %339 = vmatprep.subr.bf16.mxu0 0
    %340 = vmatpush1.bf16.msra.mxu0 %v324
    %341 = vmatprep.subr.bf16.mxu0 0
    %342 = vmatpush1.bf16.msra.mxu0 %v323
    %343 = vmatprep.subr.bf16.mxu0 0
    %344 = vmatpush1.bf16.msra.mxu0 %v322
    %345 = vmatprep.subr.bf16.mxu0 0
    %346 = vmatpush1.bf16.msra.mxu0 %v321
    %347 = vmatprep.subr.bf16.mxu0 0
    %348 = vmatpush1.bf16.msra.mxu0 %v320
    %349 = vmatprep.subr.bf16.mxu0 0
    %350 = vmatpush1.bf16.msra.mxu0 %v319
    %351 = vmatprep.subr.bf16.mxu0 0
    %352 = vmatpush2.bf16.msra.mxu0 0
    %353 = vmatprep.subr.bf16.mxu0 0
    %354 = vmatpush2.bf16.msra.mxu0 0
    %355 = vmatprep.subr.bf16.mxu0 0
    %356 = vmatpush2.bf16.msra.mxu0 0
    %357 = vmatprep.subr.bf16.mxu0 0
    %358 = vmatpush2.bf16.msra.mxu0 0
    %359 = vmatprep.subr.bf16.mxu0 0
    %360 = vmatpush2.bf16.msra.mxu0 0
    %361 = vmatprep.subr.bf16.mxu0 0
    %362 = vmatpush2.bf16.msra.mxu0 0
    %363 = vmatprep.subr.bf16.mxu0 0
    %364 = vmatpush2.bf16.msra.mxu0 0
    %365 = vmatprep.subr.bf16.mxu0 0
    %366 = vmatpush2.bf16.msra.mxu0 0
    %367 = vmatprep.mubr.bf16.mxu0 0
    %368 = vmatmul.mubr.bf16.gmra.mxu0 %v264
    %v369 = vpop.f32.mrf.mxu0
    %v370 = vadd.f32 %v285, %v369
    %v371 = vpop.f32.mrf.mxu0
    %v372 = vpop.f32.mrf.mxu0
    %v373 = vpop.f32.mrf.mxu0
    %374 = vdwg.mxu0
    %375 = vst [vmem:[#allocation10] sm:$0xff] %v370
    // Predicated region
    $region46: #{tpu_custom_call.1} parent=1 // pred_check
      _
    $region47: #{tpu_custom_call.1} parent=1 // pred_check_branch
      %377 = sbr.rel (0) target = $region49
    $region48: #{tpu_custom_call.1} parent=1 // pred_region
      %s379 = ssub.s32 128, 128
      %380 = vsyncadd [#allocation4], %s379
      %s382 = sshll.u32 [#allocation10], 4
      %s383 = int_to_ptr.vmem [resolvable:$true] %s382
      %385 = dma.vmem_to_hbm [thread:$0]  %s383, 128, %s7, [#allocation4]
    $region49: #{tpu_custom_call.1} parent=1 // pred_fallthru
      _
    // Predicated region
    $region50: #{tpu_custom_call.1} parent=1 // pred_check
      _
    $region51: #{tpu_custom_call.1} parent=1 // pred_check_branch
      %387 = sbr.rel (0) target = $region53
    $region52: #{tpu_custom_call.1} parent=1 // pred_region
      %388 = dma.done [#allocation4], 128
    $region53: #{tpu_custom_call.1} parent=1 // pred_fallthru
      _
    %389 = vsyncpa [#allocation3], 1
    %390 = vsyncpa [#allocation6], 1
    %391 = vsyncpa [#allocation9], 1
    %392 = vsyncpa [#allocation4], 1

</llo_original>
